<compile_context>
chip_gen: v7x
topology: tpu7x:2x2x1
jax: 0.10.0
libtpu: 0.0.40
codegen_flags: <defaults>
</compile_context>

<pallas_src>
import functools

import jax
import jax.numpy as jnp
from jax.experimental import pallas as pl
from jax.experimental.pallas import tpu as pltpu


NEG_SLOPE = 0.01  # nn.LeakyReLU default negative_slope


def _leaky_relu(h):
    return jnp.where(h >= 0, h, NEG_SLOPE * h)


def mlp_kernel(x_ref, w1_ref, b1_ref, w2_ref, b2_ref, w3_ref, b3_ref, o_ref):
    # x_ref : (tb, d_in) batch-major tile (batch on the sublane axis).
    # w*_ref: (in, out) weights (pre-transposed once in the wrapper), resident.
    # b*_ref: (1, out) f32 biases, broadcast along the batch axis.
    x = x_ref[...]

    h = jnp.dot(x, w1_ref[...], preferred_element_type=jnp.float32) + b1_ref[...]
    h = _leaky_relu(h)

    h = jnp.dot(h.astype(w2_ref.dtype), w2_ref[...],
                preferred_element_type=jnp.float32) + b2_ref[...]
    h = _leaky_relu(h)

    h = jnp.dot(h.astype(w3_ref.dtype), w3_ref[...],
                preferred_element_type=jnp.float32) + b3_ref[...]
    h = _leaky_relu(h)  # out_act is also LeakyReLU

    o_ref[...] = h.astype(o_ref.dtype)


@functools.partial(jax.jit, static_argnames=("tile_b", "compute_dtype"))
def mlp_forward(x, w1, b1, w2, b2, w3, b3, *, tile_b=4096, compute_dtype=None):
    """MLP forward: x (B, d_in) -> (B, d_out).

    Weights are PyTorch-layout (out_dim, in_dim); biases are (out_dim,).
    Output dtype is `compute_dtype` (defaults to x.dtype).  On v6e/v7x pass
    compute_dtype=jnp.bfloat16 to halve the HBM-facing streams; accumulation
    and biases stay f32.
    """
    B, d_in = x.shape
    d_out = w3.shape[0]

    cdt = compute_dtype if compute_dtype is not None else x.dtype

    # One-time tiny wrapper prep (weights are a few KB): transpose to (in,out)
    # so the kernel is a plain batch-major x @ w, and pre-cast so there are no
    # per-step casts of the resident weights.
    x = x.astype(cdt)
    w1t, w2t, w3t = (w.T.astype(cdt) for w in (w1, w2, w3))
    b1r, b2r, b3r = (b.reshape(1, -1).astype(jnp.float32) for b in (b1, b2, b3))

    # Batch tile: batch is on the sublane axis -> multiple of 8.  Large tiles
    # amortize the ~0.35us/step pipeline overhead; clamp for small batches so
    # we don't over-pad, and keep the grid >= 2 once B >= 256 so v7x's two
    # TensorCores both get work under dimension_semantics=("parallel",).
    tb = max(8, (int(tile_b) // 8) * 8)
    if B >= 256:
        tb = min(tb, pl.cdiv(pl.cdiv(B, 2), 8) * 8)
    else:
        tb = min(tb, pl.cdiv(B, 8) * 8)
    n_steps = pl.cdiv(B, tb)

    # Resident (constant index_map) weight / bias streams.
    full = lambda arr: pl.BlockSpec(arr.shape, lambda i: (0,) * arr.ndim)

    # No wrapper-side transpose / pad / slice: Pallas masks the ragged last
    # batch block on both the input read and the output write.
    out = pl.pallas_call(
        mlp_kernel,
        out_shape=jax.ShapeDtypeStruct((B, d_out), cdt),
        grid_spec=pltpu.PrefetchScalarGridSpec(
            num_scalar_prefetch=0,
            grid=(n_steps,),
            in_specs=[
                pl.BlockSpec((tb, d_in), lambda i: (i, 0)),  # x tile
                full(w1t), full(b1r),
                full(w2t), full(b2r),
                full(w3t), full(b3r),
            ],
            out_specs=pl.BlockSpec((tb, d_out), lambda i: (i, 0)),
        ),
        compiler_params=pltpu.CompilerParams(
            dimension_semantics=("parallel",),
        ),
    )(x, w1t, b1r, w2t, b2r, w3t, b3r)

    return out


def init_linear(key, in_dim, out_dim, dtype=jnp.float32):
    # PyTorch nn.Linear default init: U(-1/sqrt(in_dim), 1/sqrt(in_dim)).
    # Weight in PyTorch layout (out_dim, in_dim); bias (out_dim,).
    kw, kb = jax.random.split(key)
    bound = 1.0 / float(in_dim) ** 0.5
    w = jax.random.uniform(kw, (out_dim, in_dim), dtype, minval=-bound, maxval=bound)
    b = jax.random.uniform(kb, (out_dim,), dtype, minval=-bound, maxval=bound)
    return w, b


def reference_mlp(x, params):
    h = x
    for (w, b) in params:  # w: (out, in), b: (out,)
        h = jnp.dot(h, w.T) + b
        h = _leaky_relu(h)
    return h


if __name__ == "__main__":
    # Shapes consistent with the module: MLP(input_dim=8, output_dim=4)
    input_dim, output_dim = 8, 4
    num_neurons = [64, 32]
    batch = 16

    key = jax.random.PRNGKey(0)
    kx, k1, k2, k3, kx2 = jax.random.split(key, 5)

    x = jax.random.normal(kx, (batch, input_dim), jnp.float32)

    w1, b1 = init_linear(k1, input_dim, num_neurons[0])
    w2, b2 = init_linear(k2, num_neurons[0], num_neurons[1])
    w3, b3 = init_linear(k3, num_neurons[1], output_dim)

    params = [(w1, b1), (w2, b2), (w3, b3)]

    # Default f32 path, single-step grid.
    out = jax.block_until_ready(mlp_forward(x, w1, b1, w2, b2, w3, b3))
    ref = reference_mlp(x, params)
    assert out.shape == (batch, output_dim)
    assert jnp.allclose(out, ref, atol=1e-5, rtol=1e-5), "mismatch vs reference"

    # Ragged multi-step grid (B not a multiple of the tile), f32 path.
    B2 = 1000
    x2 = jax.random.normal(kx2, (B2, input_dim), jnp.float32)
    out2 = jax.block_until_ready(mlp_forward(x2, w1, b1, w2, b2, w3, b3))
    ref2 = reference_mlp(x2, params)
    assert out2.shape == (B2, output_dim)
    assert jnp.allclose(out2, ref2, atol=1e-5, rtol=1e-5), "ragged mismatch"

    # bf16 HBM-stream path (recommended on v6e/v7x); f32 accumulation.
    out_bf = jax.block_until_ready(
        mlp_forward(x2, w1, b1, w2, b2, w3, b3, compute_dtype=jnp.bfloat16))
    assert out_bf.dtype == jnp.bfloat16
    assert jnp.allclose(out_bf.astype(jnp.float32), ref2, atol=5e-2, rtol=5e-2), \
        "bf16 mismatch"

    print("KERNEL_OK")
</pallas_src>

<mosaic_0001>
module attributes {stable_mosaic.version = 11 : i64} {
  func.func @mlp_kernel(%arg0: i32, %arg1: memref<16x8xf32, #tpu.memory_space<vmem>>, %arg2: memref<8x64xf32, #tpu.memory_space<vmem>>, %arg3: memref<1x64xf32, #tpu.memory_space<vmem>>, %arg4: memref<64x32xf32, #tpu.memory_space<vmem>>, %arg5: memref<1x32xf32, #tpu.memory_space<vmem>>, %arg6: memref<32x4xf32, #tpu.memory_space<vmem>>, %arg7: memref<1x4xf32, #tpu.memory_space<vmem>>, %arg8: memref<16x4xf32, #tpu.memory_space<vmem>>) attributes {dimension_semantics = [#tpu.dimension_semantics<parallel>], iteration_bounds = array<i64: 1>, scalar_prefetch = 0 : i64, scratch_operands = 0 : i64, tpu.core_type = #tpu.core_type<tc>, window_params = [{transform_indices = @transform_0, window_bounds = array<i64: 16, 8>}, {pipeline_mode = #tpu.pipeline_mode<synchronous>, transform_indices = @transform_1, window_bounds = array<i64: 8, 64>}, {pipeline_mode = #tpu.pipeline_mode<synchronous>, transform_indices = @transform_2, window_bounds = array<i64: 1, 64>}, {pipeline_mode = #tpu.pipeline_mode<synchronous>, transform_indices = @transform_3, window_bounds = array<i64: 64, 32>}, {pipeline_mode = #tpu.pipeline_mode<synchronous>, transform_indices = @transform_4, window_bounds = array<i64: 1, 32>}, {pipeline_mode = #tpu.pipeline_mode<synchronous>, transform_indices = @transform_5, window_bounds = array<i64: 32, 4>}, {pipeline_mode = #tpu.pipeline_mode<synchronous>, transform_indices = @transform_6, window_bounds = array<i64: 1, 4>}, {transform_indices = @transform_7, window_bounds = array<i64: 16, 4>}]} {
    %c0 = arith.constant 0 : index
    %c0_0 = arith.constant 0 : index
    %0 = vector.load %arg1[%c0, %c0_0] : memref<16x8xf32, #tpu.memory_space<vmem>>, vector<16x8xf32>
    %c0_1 = arith.constant 0 : index
    %c0_2 = arith.constant 0 : index
    %1 = vector.load %arg2[%c0_1, %c0_2] : memref<8x64xf32, #tpu.memory_space<vmem>>, vector<8x64xf32>
    %cst = arith.constant dense<0.000000e+00> : vector<16x64xf32>
    %2 = tpu.matmul %0, %1, %cst {dimension_numbers = #tpu.dot_dimension_numbers<[1], [0], [0], [1], [0, 0, 1, 1], [], []>} : vector<16x8xf32>, vector<8x64xf32>, vector<16x64xf32> -> vector<16x64xf32>
    %c0_3 = arith.constant 0 : index
    %c0_4 = arith.constant 0 : index
    %3 = vector.load %arg3[%c0_3, %c0_4] : memref<1x64xf32, #tpu.memory_space<vmem>>, vector<1x64xf32>
    %4 = vector.broadcast %3 : vector<1x64xf32> to vector<16x64xf32>
    %5 = arith.addf %2, %4 : vector<16x64xf32>
    %cst_5 = arith.constant 0.000000e+00 : f32
    %6 = vector.broadcast %cst_5 : f32 to vector<16x64xf32>
    %7 = arith.cmpf oge, %5, %6 : vector<16x64xf32>
    %cst_6 = arith.constant 0.00999999977 : f32
    %8 = vector.broadcast %cst_6 : f32 to vector<16x64xf32>
    %9 = arith.mulf %8, %5 : vector<16x64xf32>
    %10 = arith.select %7, %5, %9 : vector<16x64xi1>, vector<16x64xf32>
    %c0_7 = arith.constant 0 : index
    %c0_8 = arith.constant 0 : index
    %11 = vector.load %arg4[%c0_7, %c0_8] : memref<64x32xf32, #tpu.memory_space<vmem>>, vector<64x32xf32>
    %cst_9 = arith.constant dense<0.000000e+00> : vector<16x32xf32>
    %12 = tpu.matmul %10, %11, %cst_9 {dimension_numbers = #tpu.dot_dimension_numbers<[1], [0], [0], [1], [0, 0, 1, 1], [], []>} : vector<16x64xf32>, vector<64x32xf32>, vector<16x32xf32> -> vector<16x32xf32>
    %c0_10 = arith.constant 0 : index
    %c0_11 = arith.constant 0 : index
    %13 = vector.load %arg5[%c0_10, %c0_11] : memref<1x32xf32, #tpu.memory_space<vmem>>, vector<1x32xf32>
    %14 = vector.broadcast %13 : vector<1x32xf32> to vector<16x32xf32>
    %15 = arith.addf %12, %14 : vector<16x32xf32>
    %cst_12 = arith.constant 0.000000e+00 : f32
    %16 = vector.broadcast %cst_12 : f32 to vector<16x32xf32>
    %17 = arith.cmpf oge, %15, %16 : vector<16x32xf32>
    %cst_13 = arith.constant 0.00999999977 : f32
    %18 = vector.broadcast %cst_13 : f32 to vector<16x32xf32>
    %19 = arith.mulf %18, %15 : vector<16x32xf32>
    %20 = arith.select %17, %15, %19 : vector<16x32xi1>, vector<16x32xf32>
    %c0_14 = arith.constant 0 : index
    %c0_15 = arith.constant 0 : index
    %21 = vector.load %arg6[%c0_14, %c0_15] : memref<32x4xf32, #tpu.memory_space<vmem>>, vector<32x4xf32>
    %cst_16 = arith.constant dense<0.000000e+00> : vector<16x4xf32>
    %22 = tpu.matmul %20, %21, %cst_16 {dimension_numbers = #tpu.dot_dimension_numbers<[1], [0], [0], [1], [0, 0, 1, 1], [], []>} : vector<16x32xf32>, vector<32x4xf32>, vector<16x4xf32> -> vector<16x4xf32>
    %c0_17 = arith.constant 0 : index
    %c0_18 = arith.constant 0 : index
    %23 = vector.load %arg7[%c0_17, %c0_18] : memref<1x4xf32, #tpu.memory_space<vmem>>, vector<1x4xf32>
    %24 = vector.broadcast %23 : vector<1x4xf32> to vector<16x4xf32>
    %25 = arith.addf %22, %24 : vector<16x4xf32>
    %cst_19 = arith.constant 0.000000e+00 : f32
    %26 = vector.broadcast %cst_19 : f32 to vector<16x4xf32>
    %27 = arith.cmpf oge, %25, %26 : vector<16x4xf32>
    %cst_20 = arith.constant 0.00999999977 : f32
    %28 = vector.broadcast %cst_20 : f32 to vector<16x4xf32>
    %29 = arith.mulf %28, %25 : vector<16x4xf32>
    %30 = arith.select %27, %25, %29 : vector<16x4xi1>, vector<16x4xf32>
    %c0_21 = arith.constant 0 : index
    %c0_22 = arith.constant 0 : index
    %31 = vector.load %arg8[%c0_21, %c0_22] : memref<16x4xf32, #tpu.memory_space<vmem>>, vector<16x4xf32>
    tpu.vector_store %arg8[%c0_21, %c0_22], %30 {strides = array<i32>} : memref<16x4xf32, #tpu.memory_space<vmem>>, vector<16x4xf32>,
    return
  }
  func.func @transform_0(%arg0: i32) -> (i32, i32) {
    %c0_i32 = arith.constant 0 : i32
    %c0_i32_0 = arith.constant 0 : i32
    return %arg0, %c0_i32 : i32, i32
  }
  func.func @transform_1(%arg0: i32) -> (i32, i32) {
    %c0_i32 = arith.constant 0 : i32
    %c0_i32_0 = arith.constant 0 : i32
    %c0_i32_1 = arith.constant 0 : i32
    return %c0_i32, %c0_i32_0 : i32, i32
  }
  func.func @transform_2(%arg0: i32) -> (i32, i32) {
    %c0_i32 = arith.constant 0 : i32
    %c0_i32_0 = arith.constant 0 : i32
    %c0_i32_1 = arith.constant 0 : i32
    return %c0_i32, %c0_i32_0 : i32, i32
  }
  func.func @transform_3(%arg0: i32) -> (i32, i32) {
    %c0_i32 = arith.constant 0 : i32
    %c0_i32_0 = arith.constant 0 : i32
    %c0_i32_1 = arith.constant 0 : i32
    return %c0_i32, %c0_i32_0 : i32, i32
  }
  func.func @transform_4(%arg0: i32) -> (i32, i32) {
    %c0_i32 = arith.constant 0 : i32
    %c0_i32_0 = arith.constant 0 : i32
    %c0_i32_1 = arith.constant 0 : i32
    return %c0_i32, %c0_i32_0 : i32, i32
  }
  func.func @transform_5(%arg0: i32) -> (i32, i32) {
    %c0_i32 = arith.constant 0 : i32
    %c0_i32_0 = arith.constant 0 : i32
    %c0_i32_1 = arith.constant 0 : i32
    return %c0_i32, %c0_i32_0 : i32, i32
  }
  func.func @transform_6(%arg0: i32) -> (i32, i32) {
    %c0_i32 = arith.constant 0 : i32
    %c0_i32_0 = arith.constant 0 : i32
    %c0_i32_1 = arith.constant 0 : i32
    return %c0_i32, %c0_i32_0 : i32, i32
  }
  func.func @transform_7(%arg0: i32) -> (i32, i32) {
    %c0_i32 = arith.constant 0 : i32
    %c0_i32_0 = arith.constant 0 : i32
    return %arg0, %c0_i32 : i32, i32
  }
}

</mosaic_0001>

<llo_original>
// kernel: mlp_forward.1
$region0: #{mlp_forward.1}
  #allocation0 [shape = 'u32[]', space=smem, size = 0x4, offset = 0x4, fixed_abs, tag = 'smem constant byte address 0x4 - core index']
  #allocation1 [shape = 'u32[144,128]{1,0:T(1,128)}', space=vmem, size = 0x12000, scoped, tag = 'internal scratch']
  %s0 = inlined_call_operand.vmem [shape: f32[16,8], index: 0, kind: input, shape index: {}]
  %s1 = inlined_call_operand.vmem [shape: f32[8,64], index: 1, kind: input, shape index: {}]
  %s2 = inlined_call_operand.vmem [shape: f32[1,64], index: 2, kind: input, shape index: {}]
  %s3 = inlined_call_operand.vmem [shape: f32[64,32], index: 3, kind: input, shape index: {}]
  %s4 = inlined_call_operand.vmem [shape: f32[1,32], index: 4, kind: input, shape index: {}]
  %s5 = inlined_call_operand.vmem [shape: f32[32,4], index: 5, kind: input, shape index: {}]
  %s6 = inlined_call_operand.vmem [shape: f32[1,4], index: 6, kind: input, shape index: {}]
  %s7 = inlined_call_operand.vmem [shape: f32[16,4], index: 7, kind: output, shape index: {}]
  %s8 = sld [smem:[#allocation0]]
  $region38: #{mlp_forward.1} parent=0
    _
  %s10 = ssub.s32 1, %s8
  %s11 = scalar_select 0, %s10, %s8
  // Predicated region
  $region2: #{mlp_forward.1} parent=0 // pred_check
    _
  $region3: #{mlp_forward.1} parent=0 // pred_check_branch
    %13 = sbr.rel (0) target = $region5
  $region4: #{mlp_forward.1} parent=0 // pred_region
    _
  $region5: #{mlp_forward.1} parent=0 // pred_fallthru
    _
  // Predicated region
  $region6: #{mlp_forward.1} parent=0 // pred_check
    _
  $region7: #{mlp_forward.1} parent=0 // pred_check_branch
    %15 = sbr.rel (0) target = $region9
  $region8: #{mlp_forward.1} parent=0 // pred_region
    _
  $region9: #{mlp_forward.1} parent=0 // pred_fallthru
    _
  // Predicated region
  $region10: #{mlp_forward.1} parent=0 // pred_check
    _
  $region11: #{mlp_forward.1} parent=0 // pred_check_branch
    %17 = sbr.rel (0) target = $region13
  $region12: #{mlp_forward.1} parent=0 // pred_region
    _
  $region13: #{mlp_forward.1} parent=0 // pred_fallthru
    _
  // Predicated region
  $region14: #{mlp_forward.1} parent=0 // pred_check
    _
  $region15: #{mlp_forward.1} parent=0 // pred_check_branch
    %19 = sbr.rel (0) target = $region17
  $region16: #{mlp_forward.1} parent=0 // pred_region
    _
  $region17: #{mlp_forward.1} parent=0 // pred_fallthru
    _
  // Predicated region
  $region18: #{mlp_forward.1} parent=0 // pred_check
    _
  $region19: #{mlp_forward.1} parent=0 // pred_check_branch
    %21 = sbr.rel (0) target = $region21
  $region20: #{mlp_forward.1} parent=0 // pred_region
    _
  $region21: #{mlp_forward.1} parent=0 // pred_fallthru
    _
  // Predicated region
  $region22: #{mlp_forward.1} parent=0 // pred_check
    _
  $region23: #{mlp_forward.1} parent=0 // pred_check_branch
    %23 = sbr.rel (0) target = $region25
  $region24: #{mlp_forward.1} parent=0 // pred_region
    _
  $region25: #{mlp_forward.1} parent=0 // pred_fallthru
    _
  // Predicated region
  $region26: #{mlp_forward.1} parent=0 // pred_check
    _
  $region27: #{mlp_forward.1} parent=0 // pred_check_branch
    %25 = sbr.rel (0) target = $region29
  $region28: #{mlp_forward.1} parent=0 // pred_region
    _
  $region29: #{mlp_forward.1} parent=0 // pred_fallthru
    _
  %v26 = vld [vmem:[%s0] sm:$0xff]
  %v27 = vld [vmem:[%s0 + $0x8] sm:$0xff]
  %v28 = vld [vmem:[%s1] sm:$0xff]
  %v29 = vld [vmem:[%s2] sm:$0x1]
  %v31 = vlaneseq
  %v32 = vshrl.u32 %v31, 7
  %v33 = vsub.s32 0, %v32
  %v34 = vrot.slane %v29, %v33
  %vm36 = vcmask 64512
  %v38 = vsel %vm36, %v26, 0
  %v41 = vsel %vm36, %v27, 0
  %43 = vmatprep.subr.mxu0 0.0
  %44 = vmatpush1.msra.mxu0 %v28
  %45 = vmatprep.subr.mxu0 0.0
  %46 = vmatpush1.msra.mxu0 0.0
  %47 = vmatprep.subr.mxu0 0.0
  %48 = vmatpush1.msra.mxu0 0.0
  %49 = vmatprep.subr.mxu0 0.0
  %50 = vmatpush1.msra.mxu0 0.0
  %51 = vmatprep.subr.mxu0 0.0
  %52 = vmatpush1.msra.mxu0 0.0
  %53 = vmatprep.subr.mxu0 0.0
  %54 = vmatpush1.msra.mxu0 0.0
  %55 = vmatprep.subr.mxu0 0.0
  %56 = vmatpush1.msra.mxu0 0.0
  %57 = vmatprep.subr.mxu0 0.0
  %58 = vmatpush1.msra.mxu0 0.0
  %59 = vmatprep.subr.mxu0 0.0
  %60 = vmatpush1.msra.mxu0 0.0
  %61 = vmatprep.subr.mxu0 0.0
  %62 = vmatpush1.msra.mxu0 0.0
  %63 = vmatprep.subr.mxu0 0.0
  %64 = vmatpush1.msra.mxu0 0.0
  %65 = vmatprep.subr.mxu0 0.0
  %66 = vmatpush1.msra.mxu0 0.0
  %67 = vmatprep.subr.mxu0 0.0
  %68 = vmatpush1.msra.mxu0 0.0
  %69 = vmatprep.subr.mxu0 0.0
  %70 = vmatpush1.msra.mxu0 0.0
  %71 = vmatprep.subr.mxu0 0.0
  %72 = vmatpush1.msra.mxu0 0.0
  %73 = vmatprep.subr.mxu0 0.0
  %74 = vmatpush1.msra.mxu0 0.0
  %75 = vmatprep.subr.mxu0 0.0
  %76 = vmatpush1.msra.mxu0 0.0
  %77 = vmatprep.subr.mxu0 0.0
  %78 = vmatpush1.msra.mxu0 0.0
  %79 = vmatprep.subr.mxu0 0.0
  %80 = vmatpush1.msra.mxu0 0.0
  %81 = vmatprep.subr.mxu0 0.0
  %82 = vmatpush1.msra.mxu0 0.0
  %83 = vmatprep.subr.mxu0 0.0
  %84 = vmatpush1.msra.mxu0 0.0
  %85 = vmatprep.subr.mxu0 0.0
  %86 = vmatpush1.msra.mxu0 0.0
  %87 = vmatprep.subr.mxu0 0.0
  %88 = vmatpush1.msra.mxu0 0.0
  %89 = vmatprep.subr.mxu0 0.0
  %90 = vmatpush1.msra.mxu0 0.0
  %91 = vmatprep.subr.mxu0 0.0
  %92 = vmatpush1.msra.mxu0 0.0
  %93 = vmatprep.subr.mxu0 0.0
  %94 = vmatpush1.msra.mxu0 0.0
  %95 = vmatprep.subr.mxu0 0.0
  %96 = vmatpush1.msra.mxu0 0.0
  %97 = vmatprep.subr.mxu0 0.0
  %98 = vmatpush1.msra.mxu0 0.0
  %99 = vmatprep.subr.mxu0 0.0
  %100 = vmatpush1.msra.mxu0 0.0
  %101 = vmatprep.subr.mxu0 0.0
  %102 = vmatpush1.msra.mxu0 0.0
  %103 = vmatprep.subr.mxu0 0.0
  %104 = vmatpush1.msra.mxu0 0.0
  %105 = vmatprep.subr.mxu0 0.0
  %106 = vmatpush1.msra.mxu0 0.0
  %107 = vmatprep.mubr.f32.mxu0 0.0
  %108 = vmatmul.mubr.f32.gmra.mrb[0].mxu0 %v38
  %v109 = vpop.f32.mrb[0].mxu0
  %v110 = vadd.f32 %v34, %v109
  %v111 = vpop.f32.mrb[0].mxu0
  %112 = vmatprep.mubr.f32.mxu0 0.0
  %113 = vmatmul.mubr.f32.gmra.mrb[0].mxu0 %v41
  %v114 = vpop.f32.mrb[0].mxu0
  %v115 = vadd.f32 %v34, %v114
  %v116 = vpop.f32.mrb[0].mxu0
  %117 = vdwg.mxu0
  %vm118 = vcmp.ge.f32.partialorder %v110, 0.0
  %vm119 = vcmp.ge.f32.partialorder %v115, 0.0
  %v120 = vmul.f32 %v110, 0.01
  %v121 = vmul.f32 %v115, 0.01
  %v122 = vsel %vm118, %v110, %v120
  %v123 = vsel %vm119, %v115, %v121
  %v124 = vld [vmem:[%s3] sm:$0xff]
  %v125 = vld [vmem:[%s3 + $0x8] sm:$0xff]
  %v126 = vld [vmem:[%s3 + $0x10] sm:$0xff]
  %v127 = vld [vmem:[%s3 + $0x18] sm:$0xff]
  %v128 = vld [vmem:[%s3 + $0x20] sm:$0xff]
  %v129 = vld [vmem:[%s3 + $0x28] sm:$0xff]
  %v130 = vld [vmem:[%s3 + $0x30] sm:$0xff]
  %v131 = vld [vmem:[%s3 + $0x38] sm:$0xff]
  %v132 = vld [vmem:[%s4] sm:$0x1]
  %v134 = vlaneseq
  %v135 = vshrl.u32 %v134, 7
  %v136 = vsub.s32 0, %v135
  %v137 = vrot.slane %v132, %v136
  %vm139 = vcmask 523264
  %v141 = vsel %vm139, %v122, 0
  %v144 = vsel %vm139, %v123, 0
  %146 = vmatprep.subr.mxu0 0.0
  %147 = vmatpush1.msra.mxu0 %v124
  %148 = vmatprep.subr.mxu0 0.0
  %149 = vmatpush1.msra.mxu0 %v125
  %150 = vmatprep.subr.mxu0 0.0
  %151 = vmatpush1.msra.mxu0 %v126
  %152 = vmatprep.subr.mxu0 0.0
  %153 = vmatpush1.msra.mxu0 %v127
  %154 = vmatprep.subr.mxu0 0.0
  %155 = vmatpush1.msra.mxu0 %v128
  %156 = vmatprep.subr.mxu0 0.0
  %157 = vmatpush1.msra.mxu0 %v129
  %158 = vmatprep.subr.mxu0 0.0
  %159 = vmatpush1.msra.mxu0 %v130
  %160 = vmatprep.subr.mxu0 0.0
  %161 = vmatpush1.msra.mxu0 %v131
  %162 = vmatprep.subr.mxu0 0.0
  %163 = vmatpush1.msra.mxu0 0.0
  %164 = vmatprep.subr.mxu0 0.0
  %165 = vmatpush1.msra.mxu0 0.0
  %166 = vmatprep.subr.mxu0 0.0
  %167 = vmatpush1.msra.mxu0 0.0
  %168 = vmatprep.subr.mxu0 0.0
  %169 = vmatpush1.msra.mxu0 0.0
  %170 = vmatprep.subr.mxu0 0.0
  %171 = vmatpush1.msra.mxu0 0.0
  %172 = vmatprep.subr.mxu0 0.0
  %173 = vmatpush1.msra.mxu0 0.0
  %174 = vmatprep.subr.mxu0 0.0
  %175 = vmatpush1.msra.mxu0 0.0
  %176 = vmatprep.subr.mxu0 0.0
  %177 = vmatpush1.msra.mxu0 0.0
  %178 = vmatprep.subr.mxu0 0.0
  %179 = vmatpush1.msra.mxu0 0.0
  %180 = vmatprep.subr.mxu0 0.0
  %181 = vmatpush1.msra.mxu0 0.0
  %182 = vmatprep.subr.mxu0 0.0
  %183 = vmatpush1.msra.mxu0 0.0
  %184 = vmatprep.subr.mxu0 0.0
  %185 = vmatpush1.msra.mxu0 0.0
  %186 = vmatprep.subr.mxu0 0.0
  %187 = vmatpush1.msra.mxu0 0.0
  %188 = vmatprep.subr.mxu0 0.0
  %189 = vmatpush1.msra.mxu0 0.0
  %190 = vmatprep.subr.mxu0 0.0
  %191 = vmatpush1.msra.mxu0 0.0
  %192 = vmatprep.subr.mxu0 0.0
  %193 = vmatpush1.msra.mxu0 0.0
  %194 = vmatprep.subr.mxu0 0.0
  %195 = vmatpush1.msra.mxu0 0.0
  %196 = vmatprep.subr.mxu0 0.0
  %197 = vmatpush1.msra.mxu0 0.0
  %198 = vmatprep.subr.mxu0 0.0
  %199 = vmatpush1.msra.mxu0 0.0
  %200 = vmatprep.subr.mxu0 0.0
  %201 = vmatpush1.msra.mxu0 0.0
  %202 = vmatprep.subr.mxu0 0.0
  %203 = vmatpush1.msra.mxu0 0.0
  %204 = vmatprep.subr.mxu0 0.0
  %205 = vmatpush1.msra.mxu0 0.0
  %206 = vmatprep.subr.mxu0 0.0
  %207 = vmatpush1.msra.mxu0 0.0
  %208 = vmatprep.subr.mxu0 0.0
  %209 = vmatpush1.msra.mxu0 0.0
  %210 = vmatprep.mubr.f32.mxu0 0.0
  %211 = vmatmul.mubr.f32.gmra.mrb[0].mxu0 %v141
  %v212 = vpop.f32.mrb[0].mxu0
  %v213 = vadd.f32 %v137, %v212
  %v214 = vpop.f32.mrb[0].mxu0
  %215 = vmatprep.mubr.f32.mxu0 0.0
  %216 = vmatmul.mubr.f32.gmra.mrb[0].mxu0 %v144
  %v217 = vpop.f32.mrb[0].mxu0
  %v218 = vadd.f32 %v137, %v217
  %v219 = vpop.f32.mrb[0].mxu0
  %220 = vdwg.mxu0
  %vm221 = vcmp.ge.f32.partialorder %v213, 0.0
  %vm222 = vcmp.ge.f32.partialorder %v218, 0.0
  %v223 = vmul.f32 %v213, 0.01
  %v224 = vmul.f32 %v218, 0.01
  %v225 = vsel %vm221, %v213, %v223
  %v226 = vsel %vm222, %v218, %v224
  %v227 = vld [vmem:[%s5] sm:$0xff]
  %v228 = vld [vmem:[%s5 + $0x8] sm:$0xff]
  %v229 = vld [vmem:[%s5 + $0x10] sm:$0xff]
  %v230 = vld [vmem:[%s5 + $0x18] sm:$0xff]
  %v231 = vld [vmem:[%s6] sm:$0x1]
  %v233 = vlaneseq
  %v234 = vshrl.u32 %v233, 7
  %v235 = vsub.s32 0, %v234
  %v236 = vrot.slane %v231, %v235
  %vm238 = vcmask 261120
  %v240 = vsel %vm238, %v225, 0
  %v243 = vsel %vm238, %v226, 0
  %245 = vmatprep.subr.mxu0 0.0
  %246 = vmatpush1.msra.mxu0 %v227
  %247 = vmatprep.subr.mxu0 0.0
  %248 = vmatpush1.msra.mxu0 %v228
  %249 = vmatprep.subr.mxu0 0.0
  %250 = vmatpush1.msra.mxu0 %v229
  %251 = vmatprep.subr.mxu0 0.0
  %252 = vmatpush1.msra.mxu0 %v230
  %253 = vmatprep.subr.mxu0 0.0
  %254 = vmatpush1.msra.mxu0 0.0
  %255 = vmatprep.subr.mxu0 0.0
  %256 = vmatpush1.msra.mxu0 0.0
  %257 = vmatprep.subr.mxu0 0.0
  %258 = vmatpush1.msra.mxu0 0.0
  %259 = vmatprep.subr.mxu0 0.0
  %260 = vmatpush1.msra.mxu0 0.0
  %261 = vmatprep.subr.mxu0 0.0
  %262 = vmatpush1.msra.mxu0 0.0
  %263 = vmatprep.subr.mxu0 0.0
  %264 = vmatpush1.msra.mxu0 0.0
  %265 = vmatprep.subr.mxu0 0.0
  %266 = vmatpush1.msra.mxu0 0.0
  %267 = vmatprep.subr.mxu0 0.0
  %268 = vmatpush1.msra.mxu0 0.0
  %269 = vmatprep.subr.mxu0 0.0
  %270 = vmatpush1.msra.mxu0 0.0
  %271 = vmatprep.subr.mxu0 0.0
  %272 = vmatpush1.msra.mxu0 0.0
  %273 = vmatprep.subr.mxu0 0.0
  %274 = vmatpush1.msra.mxu0 0.0
  %275 = vmatprep.subr.mxu0 0.0
  %276 = vmatpush1.msra.mxu0 0.0
  %277 = vmatprep.subr.mxu0 0.0
  %278 = vmatpush1.msra.mxu0 0.0
  %279 = vmatprep.subr.mxu0 0.0
  %280 = vmatpush1.msra.mxu0 0.0
  %281 = vmatprep.subr.mxu0 0.0
  %282 = vmatpush1.msra.mxu0 0.0
  %283 = vmatprep.subr.mxu0 0.0
  %284 = vmatpush1.msra.mxu0 0.0
  %285 = vmatprep.subr.mxu0 0.0
  %286 = vmatpush1.msra.mxu0 0.0
  %287 = vmatprep.subr.mxu0 0.0
  %288 = vmatpush1.msra.mxu0 0.0
  %289 = vmatprep.subr.mxu0 0.0
  %290 = vmatpush1.msra.mxu0 0.0
  %291 = vmatprep.subr.mxu0 0.0
  %292 = vmatpush1.msra.mxu0 0.0
  %293 = vmatprep.subr.mxu0 0.0
  %294 = vmatpush1.msra.mxu0 0.0
  %295 = vmatprep.subr.mxu0 0.0
  %296 = vmatpush1.msra.mxu0 0.0
  %297 = vmatprep.subr.mxu0 0.0
  %298 = vmatpush1.msra.mxu0 0.0
  %299 = vmatprep.subr.mxu0 0.0
  %300 = vmatpush1.msra.mxu0 0.0
  %301 = vmatprep.subr.mxu0 0.0
  %302 = vmatpush1.msra.mxu0 0.0
  %303 = vmatprep.subr.mxu0 0.0
  %304 = vmatpush1.msra.mxu0 0.0
  %305 = vmatprep.subr.mxu0 0.0
  %306 = vmatpush1.msra.mxu0 0.0
  %307 = vmatprep.subr.mxu0 0.0
  %308 = vmatpush1.msra.mxu0 0.0
  %309 = vmatprep.mubr.f32.mxu0 0.0
  %310 = vmatmul.mubr.f32.gmra.mrb[0].mxu0 %v240
  %v311 = vpop.f32.mrb[0].mxu0
  %v312 = vadd.f32 %v236, %v311
  %v313 = vpop.f32.mrb[0].mxu0
  %314 = vmatprep.mubr.f32.mxu0 0.0
  %315 = vmatmul.mubr.f32.gmra.mrb[0].mxu0 %v243
  %v316 = vpop.f32.mrb[0].mxu0
  %v317 = vadd.f32 %v236, %v316
  %v318 = vpop.f32.mrb[0].mxu0
  %319 = vdwg.mxu0
  %vm320 = vcmp.ge.f32.partialorder %v312, 0.0
  %vm321 = vcmp.ge.f32.partialorder %v317, 0.0
  %v322 = vmul.f32 %v312, 0.01
  %v323 = vmul.f32 %v317, 0.01
  %v324 = vsel %vm320, %v312, %v322
  %v325 = vsel %vm321, %v317, %v323
  %vm326 = vcmask 31744
  %327 = vst.msk [vmem:[%s7] sm:$0xff] %vm326, %v324
  %328 = vst.msk [vmem:[%s7 + $0x8] sm:$0xff] %vm326, %v325
  // Predicated region
  $region30: #{mlp_forward.1} parent=0 // pred_check
    _
  $region31: #{mlp_forward.1} parent=0 // pred_check_branch
    %330 = sbr.rel (0) target = $region33
  $region32: #{mlp_forward.1} parent=0 // pred_region
    _
  $region33: #{mlp_forward.1} parent=0 // pred_fallthru
    _
  // Predicated region
  $region34: #{mlp_forward.1} parent=0 // pred_check
    _
  $region35: #{mlp_forward.1} parent=0 // pred_check_branch
    %332 = sbr.rel (0) target = $region37
  $region36: #{mlp_forward.1} parent=0 // pred_region
    _
  $region37: #{mlp_forward.1} parent=0 // pred_fallthru
    _

</llo_original>
